<compile_context>
chip_gen: v6e
topology: v6e:2x2x1
jax: 0.10.0
libtpu: 0.0.40
codegen_flags: <defaults>
</compile_context>

<pallas_src>
import jax
import jax.numpy as jnp
from jax.experimental import pallas as pl
from jax.experimental.pallas import tpu as pltpu

# --- synthetic config (matches SequenceClassifier.__init__ structure) ---
N_HEADS = 4
HEAD_DIM = 8
EMBED = N_HEADS * HEAD_DIM        # embedding_dim = 32
SEQ = 8                           # max_sequence_length
OUT_SEQ = 4                       # out_sequence_length
NUM_CLASSES = 16                  # config.data.num_tokens
BATCH = 2
EPS = 1e-5                        # nn.LayerNorm default eps


def seq_classifier_kernel(x_ref, lnw_ref, lnb_ref, wbig_ref, bbig_ref,
                          wcls_ref, bcls_ref, o_ref):
    # x_ref: (B*S, E) — batch x seq flattened into one slab.
    x = x_ref[...].astype(jnp.float32)

    # ---- LayerNorm over the embedding dim ----
    mu = jnp.mean(x, axis=-1, keepdims=True)
    var = jnp.mean((x - mu) ** 2, axis=-1, keepdims=True)
    h = (x - mu) * jax.lax.rsqrt(var + EPS) * lnw_ref[...] + lnb_ref[...]

    # ---- SwapAxes + Linear(seq -> out_seq) + SwapAxes, fused into one matmul ----
    # y[b*T + t, e] = sum_s W_seq[s, t] * h[b*S + s, e]   (block-diagonal weight)
    y = jnp.dot(wbig_ref[...], h, preferred_element_type=jnp.float32) + bbig_ref[...]

    # ---- Linear(embed -> num_classes) ----
    z = jnp.dot(y, wcls_ref[...], preferred_element_type=jnp.float32) + bcls_ref[...]

    o_ref[...] = z.astype(o_ref.dtype)


@jax.jit
def sequence_classifier(x, params):
    ln_w, ln_b, w_seq, b_seq, w_cls, b_cls = params
    B, S, E = x.shape
    T = w_seq.shape[1]            # out_sequence_length
    C = w_cls.shape[1]            # num_classes

    # Fold SwapAxes -> Linear(S->T) -> SwapAxes into one block-diagonal matmul over the
    # flattened (B*S, E) slab (pure wrapper-side layout plumbing, constant w.r.t. x).
    w_big = jnp.kron(jnp.eye(B, dtype=w_seq.dtype), w_seq.T)    # (B*T, B*S)
    b_big = jnp.tile(b_seq.reshape(T, 1), (B, 1))               # (B*T, 1), broadcast over E
    x_flat = x.reshape(B * S, E)

    vmem = pl.BlockSpec(memory_space=pltpu.MemorySpace.VMEM)
    out_flat = pl.pallas_call(
        seq_classifier_kernel,
        out_shape=jax.ShapeDtypeStruct((B * T, C), x.dtype),
        in_specs=[vmem] * 7,
        out_specs=vmem,
    )(x_flat, ln_w, ln_b, w_big, b_big, w_cls, b_cls)
    return out_flat.reshape(B, T, C)


def reference(x, params):
    """Pure-JAX mirror of the PyTorch forward (LayerNorm -> swap -> Linear -> swap -> Linear)."""
    ln_w, ln_b, w_seq, b_seq, w_cls, b_cls = params
    mu = x.mean(-1, keepdims=True)
    var = ((x - mu) ** 2).mean(-1, keepdims=True)
    h = (x - mu) / jnp.sqrt(var + EPS) * ln_w[0] + ln_b[0]
    h = jnp.swapaxes(h, -2, -1)                 # (B, E, S)
    h = h @ w_seq + b_seq[0]                    # Linear over seq dim -> (B, E, T)
    h = jnp.swapaxes(h, -2, -1)                 # (B, T, E)
    return h @ w_cls + b_cls[0]                 # (B, T, C)


def make_params(key):
    ks = jax.random.split(key, 6)
    u = lambda k, shape, s=0.2: jax.random.uniform(k, shape, jnp.float32, -s, s)
    ln_w = 1.0 + u(ks[0], (1, EMBED))
    ln_b = u(ks[1], (1, EMBED))
    # Linear weights stored transposed vs PyTorch, i.e. (in, out), so y = x @ W + b.
    w_seq = u(ks[2], (SEQ, OUT_SEQ))
    b_seq = u(ks[3], (1, OUT_SEQ))
    w_cls = u(ks[4], (EMBED, NUM_CLASSES))
    b_cls = u(ks[5], (1, NUM_CLASSES))
    return (ln_w, ln_b, w_seq, b_seq, w_cls, b_cls)


if __name__ == "__main__":
    key = jax.random.PRNGKey(0)
    kx, kp = jax.random.split(key)
    x = jax.random.normal(kx, (BATCH, SEQ, EMBED), jnp.float32)
    params = make_params(kp)

    out = sequence_classifier(x, params)
    out = jax.block_until_ready(out)

    ref = reference(x, params)
    assert out.shape == (BATCH, OUT_SEQ, NUM_CLASSES), out.shape
    assert jnp.allclose(out, ref, atol=1e-4, rtol=1e-4), float(jnp.max(jnp.abs(out - ref)))
    print("KERNEL_OK")
</pallas_src>

<mosaic_0001>
module attributes {stable_mosaic.version = 11 : i64} {
  func.func @seq_classifier_kernel(%arg0: memref<16x32xf32, #tpu.memory_space<vmem>>, %arg1: memref<1x32xf32, #tpu.memory_space<vmem>>, %arg2: memref<1x32xf32, #tpu.memory_space<vmem>>, %arg3: memref<8x16xf32, #tpu.memory_space<vmem>>, %arg4: memref<8x1xf32, #tpu.memory_space<vmem>>, %arg5: memref<32x16xf32, #tpu.memory_space<vmem>>, %arg6: memref<1x16xf32, #tpu.memory_space<vmem>>, %arg7: memref<8x16xf32, #tpu.memory_space<vmem>>) attributes {dimension_semantics = [], scalar_prefetch = 0 : i64, scratch_operands = 0 : i64, tpu.core_type = #tpu.core_type<tc>} {
    %c0 = arith.constant 0 : index
    %c0_0 = arith.constant 0 : index
    %0 = vector.load %arg0[%c0, %c0_0] : memref<16x32xf32, #tpu.memory_space<vmem>>, vector<16x32xf32>
    %cst = arith.constant dense<0.000000e+00> : vector<16xf32>
    %1 = vector.multi_reduction <add>, %0, %cst [1] : vector<16x32xf32> to vector<16xf32>
    %2 = vector.shape_cast %1 : vector<16xf32> to vector<16x1xf32>
    %cst_1 = arith.constant 3.200000e+01 : f32
    %3 = vector.broadcast %cst_1 : f32 to vector<16x1xf32>
    %4 = arith.divf %2, %3 : vector<16x1xf32>
    %5 = vector.broadcast %4 : vector<16x1xf32> to vector<16x32xf32>
    %6 = arith.subf %0, %5 : vector<16x32xf32>
    %7 = arith.mulf %6, %6 : vector<16x32xf32>
    %cst_2 = arith.constant dense<0.000000e+00> : vector<16xf32>
    %8 = vector.multi_reduction <add>, %7, %cst_2 [1] : vector<16x32xf32> to vector<16xf32>
    %9 = vector.shape_cast %8 : vector<16xf32> to vector<16x1xf32>
    %cst_3 = arith.constant 3.200000e+01 : f32
    %10 = vector.broadcast %cst_3 : f32 to vector<16x1xf32>
    %11 = arith.divf %9, %10 : vector<16x1xf32>
    %12 = vector.broadcast %4 : vector<16x1xf32> to vector<16x32xf32>
    %13 = arith.subf %0, %12 : vector<16x32xf32>
    %cst_4 = arith.constant 9.99999974E-6 : f32
    %14 = vector.broadcast %cst_4 : f32 to vector<16x1xf32>
    %15 = arith.addf %11, %14 : vector<16x1xf32>
    %16 = math.rsqrt %15 : vector<16x1xf32>
    %17 = vector.broadcast %16 : vector<16x1xf32> to vector<16x32xf32>
    %18 = arith.mulf %13, %17 : vector<16x32xf32>
    %c0_5 = arith.constant 0 : index
    %c0_6 = arith.constant 0 : index
    %19 = vector.load %arg1[%c0_5, %c0_6] : memref<1x32xf32, #tpu.memory_space<vmem>>, vector<1x32xf32>
    %20 = vector.broadcast %19 : vector<1x32xf32> to vector<16x32xf32>
    %21 = arith.mulf %18, %20 : vector<16x32xf32>
    %c0_7 = arith.constant 0 : index
    %c0_8 = arith.constant 0 : index
    %22 = vector.load %arg2[%c0_7, %c0_8] : memref<1x32xf32, #tpu.memory_space<vmem>>, vector<1x32xf32>
    %23 = vector.broadcast %22 : vector<1x32xf32> to vector<16x32xf32>
    %24 = arith.addf %21, %23 : vector<16x32xf32>
    %c0_9 = arith.constant 0 : index
    %c0_10 = arith.constant 0 : index
    %25 = vector.load %arg3[%c0_9, %c0_10] : memref<8x16xf32, #tpu.memory_space<vmem>>, vector<8x16xf32>
    %cst_11 = arith.constant dense<0.000000e+00> : vector<8x32xf32>
    %26 = tpu.matmul %25, %24, %cst_11 {dimension_numbers = #tpu.dot_dimension_numbers<[1], [0], [0], [1], [0, 0, 1, 1], [], []>} : vector<8x16xf32>, vector<16x32xf32>, vector<8x32xf32> -> vector<8x32xf32>
    %c0_12 = arith.constant 0 : index
    %c0_13 = arith.constant 0 : index
    %27 = vector.load %arg4[%c0_12, %c0_13] : memref<8x1xf32, #tpu.memory_space<vmem>>, vector<8x1xf32>
    %28 = vector.broadcast %27 : vector<8x1xf32> to vector<8x32xf32>
    %29 = arith.addf %26, %28 : vector<8x32xf32>
    %c0_14 = arith.constant 0 : index
    %c0_15 = arith.constant 0 : index
    %30 = vector.load %arg5[%c0_14, %c0_15] : memref<32x16xf32, #tpu.memory_space<vmem>>, vector<32x16xf32>
    %cst_16 = arith.constant dense<0.000000e+00> : vector<8x16xf32>
    %31 = tpu.matmul %29, %30, %cst_16 {dimension_numbers = #tpu.dot_dimension_numbers<[1], [0], [0], [1], [0, 0, 1, 1], [], []>} : vector<8x32xf32>, vector<32x16xf32>, vector<8x16xf32> -> vector<8x16xf32>
    %c0_17 = arith.constant 0 : index
    %c0_18 = arith.constant 0 : index
    %32 = vector.load %arg6[%c0_17, %c0_18] : memref<1x16xf32, #tpu.memory_space<vmem>>, vector<1x16xf32>
    %33 = vector.broadcast %32 : vector<1x16xf32> to vector<8x16xf32>
    %34 = arith.addf %31, %33 : vector<8x16xf32>
    %c0_19 = arith.constant 0 : index
    %c0_20 = arith.constant 0 : index
    %35 = vector.load %arg7[%c0_19, %c0_20] : memref<8x16xf32, #tpu.memory_space<vmem>>, vector<8x16xf32>
    tpu.vector_store %arg7[%c0_19, %c0_20], %34 {strides = array<i32>} : memref<8x16xf32, #tpu.memory_space<vmem>>, vector<8x16xf32>,
    return
  }
}

</mosaic_0001>

<llo_original>
// kernel: sequence_classifier.1
$region0: #{sequence_classifier.1}
  #allocation0 [shape = 'u32[]', space=smem, size = 0x4, offset = 0x4, fixed_abs, tag = 'smem constant byte address 0x4 - core index']
  #allocation1 [shape = 'u32[144,128]{1,0:T(1,128)}', space=vmem, size = 0x12000, scoped, tag = 'internal scratch']
  %s0 = inlined_call_operand.vmem [shape: f32[16,32], index: 0, kind: input, shape index: {}]
  %s1 = inlined_call_operand.vmem [shape: f32[1,32], index: 1, kind: input, shape index: {}]
  %s2 = inlined_call_operand.vmem [shape: f32[1,32], index: 2, kind: input, shape index: {}]
  %s3 = inlined_call_operand.vmem [shape: f32[8,16], index: 3, kind: input, shape index: {}]
  %s4 = inlined_call_operand.vmem [shape: f32[8,1], index: 4, kind: input, shape index: {}]
  %s5 = inlined_call_operand.vmem [shape: f32[32,16], index: 5, kind: input, shape index: {}]
  %s6 = inlined_call_operand.vmem [shape: f32[1,16], index: 6, kind: input, shape index: {}]
  %s7 = inlined_call_operand.hbm [shape: f32[8,16], index: 7, kind: output, shape index: {}]
  %s8 = sld [smem:[#allocation0]]
  $region38: #{sequence_classifier.1} parent=0
    _
  %s10 = ssub.s32 1, %s8
  %s11 = scalar_select 0, %s10, %s8
  $region1: #{sequence_classifier.1} parent=0
    #allocation2 [shape = 'u8[4096]{0}', space=vmem, size = 0x1000, scoped, tag = 'output window, operand 0, single buffered']
    #allocation3 [shape = 's32[1]{0}', space=sflag, size = 0x4, scoped, tag = 'scoped memory for sequence_classifier.1']
    %12 = vsyncpa [#allocation3], 0
    // Predicated region
    $region2: #{sequence_classifier.1} parent=1 // pred_check
      _
    $region3: #{sequence_classifier.1} parent=1 // pred_check_branch
      %14 = sbr.rel (0) target = $region5
    $region4: #{sequence_classifier.1} parent=1 // pred_region
      _
    $region5: #{sequence_classifier.1} parent=1 // pred_fallthru
      _
    // Predicated region
    $region6: #{sequence_classifier.1} parent=1 // pred_check
      _
    $region7: #{sequence_classifier.1} parent=1 // pred_check_branch
      %16 = sbr.rel (0) target = $region9
    $region8: #{sequence_classifier.1} parent=1 // pred_region
      _
    $region9: #{sequence_classifier.1} parent=1 // pred_fallthru
      _
    // Predicated region
    $region10: #{sequence_classifier.1} parent=1 // pred_check
      _
    $region11: #{sequence_classifier.1} parent=1 // pred_check_branch
      %18 = sbr.rel (0) target = $region13
    $region12: #{sequence_classifier.1} parent=1 // pred_region
      _
    $region13: #{sequence_classifier.1} parent=1 // pred_fallthru
      _
    // Predicated region
    $region14: #{sequence_classifier.1} parent=1 // pred_check
      _
    $region15: #{sequence_classifier.1} parent=1 // pred_check_branch
      %20 = sbr.rel (0) target = $region17
    $region16: #{sequence_classifier.1} parent=1 // pred_region
      _
    $region17: #{sequence_classifier.1} parent=1 // pred_fallthru
      _
    // Predicated region
    $region18: #{sequence_classifier.1} parent=1 // pred_check
      _
    $region19: #{sequence_classifier.1} parent=1 // pred_check_branch
      %22 = sbr.rel (0) target = $region21
    $region20: #{sequence_classifier.1} parent=1 // pred_region
      _
    $region21: #{sequence_classifier.1} parent=1 // pred_fallthru
      _
    // Predicated region
    $region22: #{sequence_classifier.1} parent=1 // pred_check
      _
    $region23: #{sequence_classifier.1} parent=1 // pred_check_branch
      %24 = sbr.rel (0) target = $region25
    $region24: #{sequence_classifier.1} parent=1 // pred_region
      _
    $region25: #{sequence_classifier.1} parent=1 // pred_fallthru
      _
    // Predicated region
    $region26: #{sequence_classifier.1} parent=1 // pred_check
      _
    $region27: #{sequence_classifier.1} parent=1 // pred_check_branch
      %26 = sbr.rel (0) target = $region29
    $region28: #{sequence_classifier.1} parent=1 // pred_region
      _
    $region29: #{sequence_classifier.1} parent=1 // pred_fallthru
      _
    %v27 = vld [vmem:[%s0] sm:$0xff]
    %v28 = vld [vmem:[%s0 + $0x8] sm:$0xff]
    %vm29 = vcmask 261120
    %v30 = vsel %vm29, %v27, 0.0
    %31 = vadd.xlane.f32.xlu0 %v30
    %v32 = vpop.xlane.xlu0 %31
    %v33 = vsel %vm29, %v28, 0.0
    %34 = vadd.xlane.f32.xlu0 %v33
    %v35 = vpop.xlane.xlu0 %34
    %v36 = vrcp.pop 32.0
    %v37 = vmul.f32 %v32, %v36
    %v38 = vmul.f32 %v35, %v36
    %v39 = vsub.f32 %v27, %v37
    %v40 = vsub.f32 %v28, %v38
    %v41 = vmul.f32 %v39, %v39
    %v42 = vmul.f32 %v40, %v40
    %v43 = vsel %vm29, %v41, 0.0
    %44 = vadd.xlane.f32.xlu0 %v43
    %v45 = vpop.xlane.xlu0 %44
    %v46 = vsel %vm29, %v42, 0.0
    %47 = vadd.xlane.f32.xlu0 %v46
    %v48 = vpop.xlane.xlu0 %47
    %v49 = vmul.f32 %v45, %v36
    %v50 = vmul.f32 %v48, %v36
    %v51 = vadd.f32 %v49, 1e-05
    %v52 = vadd.f32 %v50, 1e-05
    %v53 = vrsqrt.pop %v51
    %v54 = vrsqrt.pop %v52
    %v55 = vmul.f32 %v39, %v53
    %v56 = vmul.f32 %v40, %v54
    %v57 = vld [vmem:[%s1] sm:$0x1]
    %v59 = vlaneseq
    %v60 = vshrl.u32 %v59, 7
    %v61 = vsub.s32 0, %v60
    %v62 = vrot.slane %v57, %v61
    %v64 = vmul.f32 %v55, %v62
    %v65 = vmul.f32 %v56, %v62
    %v66 = vld [vmem:[%s2] sm:$0x1]
    %v68 = vlaneseq
    %v69 = vshrl.u32 %v68, 7
    %v70 = vsub.s32 0, %v69
    %v71 = vrot.slane %v66, %v70
    %v73 = vadd.f32 %v64, %v71
    %v74 = vadd.f32 %v65, %v71
    %v75 = vld [vmem:[%s3] sm:$0xff]
    %v76 = vld [vmem:[%s4] sm:$0xff]
    %78 = vset.pattern.permute.xlu0 0
    %79 = vperm.xlu0 %78, %v76
    %v80 = vpop.permute.xlu0 %79
    %vm82 = vcmask 130048
    %v84 = vsel %vm82, %v75, 0
    %86 = vmatprep.subr.mxu0 0.0
    %87 = vmatpush1.msra.mxu0 0.0
    %88 = vmatprep.subr.mxu0 0.0
    %89 = vmatpush1.msra.mxu0 0.0
    %90 = vmatprep.subr.mxu0 0.0
    %91 = vmatpush1.msra.mxu0 0.0
    %92 = vmatprep.subr.mxu0 0.0
    %93 = vmatpush1.msra.mxu0 0.0
    %94 = vmatprep.subr.mxu0 0.0
    %95 = vmatpush1.msra.mxu0 0.0
    %96 = vmatprep.subr.mxu0 0.0
    %97 = vmatpush1.msra.mxu0 0.0
    %98 = vmatprep.subr.mxu0 0.0
    %99 = vmatpush1.msra.mxu0 0.0
    %100 = vmatprep.subr.mxu0 0.0
    %101 = vmatpush1.msra.mxu0 0.0
    %102 = vmatprep.subr.mxu0 0.0
    %103 = vmatpush1.msra.mxu0 0.0
    %104 = vmatprep.subr.mxu0 0.0
    %105 = vmatpush1.msra.mxu0 0.0
    %106 = vmatprep.subr.mxu0 0.0
    %107 = vmatpush1.msra.mxu0 0.0
    %108 = vmatprep.subr.mxu0 0.0
    %109 = vmatpush1.msra.mxu0 0.0
    %110 = vmatprep.subr.mxu0 0.0
    %111 = vmatpush1.msra.mxu0 0.0
    %112 = vmatprep.subr.mxu0 0.0
    %113 = vmatpush1.msra.mxu0 0.0
    %114 = vmatprep.subr.mxu0 0.0
    %115 = vmatpush1.msra.mxu0 %v74
    %116 = vmatprep.subr.mxu0 0.0
    %117 = vmatpush1.msra.mxu0 %v73
    %118 = vmatprep.subr.mxu0 0.0
    %119 = vmatpush2.msra.mxu0 0.0
    %120 = vmatprep.subr.mxu0 0.0
    %121 = vmatpush2.msra.mxu0 0.0
    %122 = vmatprep.subr.mxu0 0.0
    %123 = vmatpush2.msra.mxu0 0.0
    %124 = vmatprep.subr.mxu0 0.0
    %125 = vmatpush2.msra.mxu0 0.0
    %126 = vmatprep.subr.mxu0 0.0
    %127 = vmatpush2.msra.mxu0 0.0
    %128 = vmatprep.subr.mxu0 0.0
    %129 = vmatpush2.msra.mxu0 0.0
    %130 = vmatprep.subr.mxu0 0.0
    %131 = vmatpush2.msra.mxu0 0.0
    %132 = vmatprep.subr.mxu0 0.0
    %133 = vmatpush2.msra.mxu0 0.0
    %134 = vmatprep.subr.mxu0 0.0
    %135 = vmatpush2.msra.mxu0 0.0
    %136 = vmatprep.subr.mxu0 0.0
    %137 = vmatpush2.msra.mxu0 0.0
    %138 = vmatprep.subr.mxu0 0.0
    %139 = vmatpush2.msra.mxu0 0.0
    %140 = vmatprep.subr.mxu0 0.0
    %141 = vmatpush2.msra.mxu0 0.0
    %142 = vmatprep.subr.mxu0 0.0
    %143 = vmatpush2.msra.mxu0 0.0
    %144 = vmatprep.subr.mxu0 0.0
    %145 = vmatpush2.msra.mxu0 0.0
    %146 = vmatprep.subr.mxu0 0.0
    %147 = vmatpush2.msra.mxu0 0.0
    %148 = vmatprep.subr.mxu0 0.0
    %149 = vmatpush2.msra.mxu0 0.0
    %150 = vmatprep.mubr.f32.mxu0 0.0
    %151 = vmatmul.mubr.f32.gmra.mxu0 %v84
    %v152 = vpop.f32.mrf.mxu0
    %v153 = vadd.f32 %v80, %v152
    %v154 = vpop.f32.mrf.mxu0
    %155 = vdwg.mxu0
    %v156 = vld [vmem:[%s5] sm:$0xff]
    %v157 = vld [vmem:[%s5 + $0x8] sm:$0xff]
    %v158 = vld [vmem:[%s5 + $0x10] sm:$0xff]
    %v159 = vld [vmem:[%s5 + $0x18] sm:$0xff]
    %v160 = vld [vmem:[%s6] sm:$0x1]
    %v162 = vlaneseq
    %v163 = vshrl.u32 %v162, 7
    %v164 = vsub.s32 0, %v163
    %v165 = vrot.slane %v160, %v164
    %v168 = vsel %vm29, %v153, 0
    %170 = vmatprep.subr.mxu0 0.0
    %171 = vmatpush1.msra.mxu0 0.0
    %172 = vmatprep.subr.mxu0 0.0
    %173 = vmatpush1.msra.mxu0 0.0
    %174 = vmatprep.subr.mxu0 0.0
    %175 = vmatpush1.msra.mxu0 0.0
    %176 = vmatprep.subr.mxu0 0.0
    %177 = vmatpush1.msra.mxu0 0.0
    %178 = vmatprep.subr.mxu0 0.0
    %179 = vmatpush1.msra.mxu0 0.0
    %180 = vmatprep.subr.mxu0 0.0
    %181 = vmatpush1.msra.mxu0 0.0
    %182 = vmatprep.subr.mxu0 0.0
    %183 = vmatpush1.msra.mxu0 0.0
    %184 = vmatprep.subr.mxu0 0.0
    %185 = vmatpush1.msra.mxu0 0.0
    %186 = vmatprep.subr.mxu0 0.0
    %187 = vmatpush1.msra.mxu0 0.0
    %188 = vmatprep.subr.mxu0 0.0
    %189 = vmatpush1.msra.mxu0 0.0
    %190 = vmatprep.subr.mxu0 0.0
    %191 = vmatpush1.msra.mxu0 0.0
    %192 = vmatprep.subr.mxu0 0.0
    %193 = vmatpush1.msra.mxu0 0.0
    %194 = vmatprep.subr.mxu0 0.0
    %195 = vmatpush1.msra.mxu0 %v159
    %196 = vmatprep.subr.mxu0 0.0
    %197 = vmatpush1.msra.mxu0 %v158
    %198 = vmatprep.subr.mxu0 0.0
    %199 = vmatpush1.msra.mxu0 %v157
    %200 = vmatprep.subr.mxu0 0.0
    %201 = vmatpush1.msra.mxu0 %v156
    %202 = vmatprep.subr.mxu0 0.0
    %203 = vmatpush2.msra.mxu0 0.0
    %204 = vmatprep.subr.mxu0 0.0
    %205 = vmatpush2.msra.mxu0 0.0
    %206 = vmatprep.subr.mxu0 0.0
    %207 = vmatpush2.msra.mxu0 0.0
    %208 = vmatprep.subr.mxu0 0.0
    %209 = vmatpush2.msra.mxu0 0.0
    %210 = vmatprep.subr.mxu0 0.0
    %211 = vmatpush2.msra.mxu0 0.0
    %212 = vmatprep.subr.mxu0 0.0
    %213 = vmatpush2.msra.mxu0 0.0
    %214 = vmatprep.subr.mxu0 0.0
    %215 = vmatpush2.msra.mxu0 0.0
    %216 = vmatprep.subr.mxu0 0.0
    %217 = vmatpush2.msra.mxu0 0.0
    %218 = vmatprep.subr.mxu0 0.0
    %219 = vmatpush2.msra.mxu0 0.0
    %220 = vmatprep.subr.mxu0 0.0
    %221 = vmatpush2.msra.mxu0 0.0
    %222 = vmatprep.subr.mxu0 0.0
    %223 = vmatpush2.msra.mxu0 0.0
    %224 = vmatprep.subr.mxu0 0.0
    %225 = vmatpush2.msra.mxu0 0.0
    %226 = vmatprep.subr.mxu0 0.0
    %227 = vmatpush2.msra.mxu0 0.0
    %228 = vmatprep.subr.mxu0 0.0
    %229 = vmatpush2.msra.mxu0 0.0
    %230 = vmatprep.subr.mxu0 0.0
    %231 = vmatpush2.msra.mxu0 0.0
    %232 = vmatprep.subr.mxu0 0.0
    %233 = vmatpush2.msra.mxu0 0.0
    %234 = vmatprep.mubr.f32.mxu0 0.0
    %235 = vmatmul.mubr.f32.gmra.mxu0 %v168
    %v236 = vpop.f32.mrf.mxu0
    %v237 = vadd.f32 %v165, %v236
    %v238 = vpop.f32.mrf.mxu0
    %239 = vdwg.mxu0
    %240 = vst.msk [vmem:[#allocation2] sm:$0xff] %vm82, %v237
    // Predicated region
    $region30: #{sequence_classifier.1} parent=1 // pred_check
      _
    $region31: #{sequence_classifier.1} parent=1 // pred_check_branch
      %242 = sbr.rel (0) target = $region33
    $region32: #{sequence_classifier.1} parent=1 // pred_region
      %s244 = ssub.s32 128, 128
      %245 = vsyncadd [#allocation3], %s244
      %s247 = sshll.u32 [#allocation2], 4
      %s248 = int_to_ptr.vmem [resolvable:$true] %s247
      %250 = dma.vmem_to_hbm [thread:$0]  %s248, 128, %s7, [#allocation3]
    $region33: #{sequence_classifier.1} parent=1 // pred_fallthru
      _
    // Predicated region
    $region34: #{sequence_classifier.1} parent=1 // pred_check
      _
    $region35: #{sequence_classifier.1} parent=1 // pred_check_branch
      %252 = sbr.rel (0) target = $region37
    $region36: #{sequence_classifier.1} parent=1 // pred_region
      %253 = dma.done [#allocation3], 128
    $region37: #{sequence_classifier.1} parent=1 // pred_fallthru
      _
    %254 = vsyncpa [#allocation3], 1

</llo_original>
